<compile_context>
chip_gen: v7x
topology: tpu7x:2x2x1
jax: 0.10.0
libtpu: 0.0.40
codegen_flags: <defaults>
</compile_context>

<pallas_src>
import numpy as np
import jax
import jax.numpy as jnp
from jax.experimental import pallas as pl
from jax.experimental.pallas import tpu as pltpu

PRECISIONS = ["fp32", "fp16", "int8", "int4", "int2"]
P = len(PRECISIONS)
KH = KW = 3
PACT_INIT = {"int8": 6.0, "int4": 4.0, "int2": 2.0}


def _round_up(x, m):
    return (x + m - 1) // m * m


def get_dual_core_options(layer_best_precision="fp16"):
    opts = [layer_best_precision]
    for i in range(len(PRECISIONS)):
        for j in range(i + 1, len(PRECISIONS)):
            opts.append(f"{PRECISIONS[i]}+{PRECISIONS[j]}")
    return opts


def _fake_quant_weight(w, bits):
    # TODO(synk): per-tensor symmetric fake quant; if the original layer quantizes
    #             per-channel the scales would differ.
    qmax = 2.0 ** (bits - 1) - 1.0
    s = jnp.maximum(jnp.max(jnp.abs(w)) / qmax, 1e-8)
    return jnp.clip(jnp.round(w / s), -qmax, qmax) * s


def quantize_weights(w_raw):
    """Fake-quantize weights per precision branch (wrapper-side, tiny tensors)."""
    wq = []
    for p, name in enumerate(PRECISIONS):
        wp = w_raw[p]
        if name == "fp32":
            wq.append(wp)
        elif name == "fp16":
            wq.append(wp.astype(jnp.float16).astype(jnp.float32))
        else:
            wq.append(_fake_quant_weight(wp, int(name[3:])))
    return jnp.stack(wq)


def compute_coefficients(outer_alpha, base_alpha, temperature=1.0):
    """Fold outer softmax and per-option inner softmax into one coef[p] per precision.

    Note: the best-precision choice mirrors the PyTorch module, which picks it with
    `.argmax().item()` at __init__ time (a host-side decision), so using np.argmax on a
    concrete base_alpha here is faithful to the spec (do not call this under jit with a
    traced base_alpha).
    """
    best_idx = int(np.argmax(np.asarray(base_alpha)))
    options = get_dual_core_options(PRECISIONS[best_idx])
    outer_w = jax.nn.softmax(outer_alpha / temperature)            # [11]
    base_inner = jax.nn.softmax(base_alpha / temperature)          # [5]

    inner = jnp.zeros((len(options), P), jnp.float32)
    inner = inner.at[0, :].set(base_inner)                         # best-single option: full base layer
    for i, opt in enumerate(options[1:], start=1):                 # dual layers: alpha=zeros(2) -> 0.5/0.5
        p1, p2 = opt.split("+")
        inner = inner.at[i, PRECISIONS.index(p1)].set(0.5)
        inner = inner.at[i, PRECISIONS.index(p2)].set(0.5)
    return outer_w @ inner                                         # [5]


def make_int_branch_specs():
    """Static (lo, hi, scale) PACT/fake-quant constants for the int branches."""
    specs = []
    for name in PRECISIONS:
        if name.startswith("int"):
            bits = int(name[3:])
            a = PACT_INIT[name]
            specs.append((0.0, float(a), float(a / (2.0 ** bits - 1.0))))
    return specs


# ----------------------------- Pallas kernel ---------------------------------
def make_dual_core_kernel(int_specs):
    """Build the kernel with PACT/fake-quant constants baked in at trace time."""

    def kernel(xt_ref, w_ref, b_ref, out_ref):
        # xt_ref:  (K_pad, TM)      f32   im2col patches, transposed (rows on lanes)
        # w_ref:   (COUT_SUB, KTOT) bf16  fused branch weights (coef folded in)
        # b_ref:   (COUT_SUB, 1)    f32   pre-summed bias
        # out_ref: (COUT_SUB, TM)   f32
        x = xt_ref[...]                                            # f32 for exact quant-level selection
        relu = jnp.maximum(x, 0.0)                                 # shared PACT lower clip (all int branches)

        pieces = [x.astype(jnp.bfloat16)]                          # merged fp32+fp16 identity branch
        for _lo, hi, scale in int_specs:                           # compile-time constants
            inv_scale = 1.0 / scale
            xq = jnp.round(jnp.minimum(relu, hi) * inv_scale) * scale
            pieces.append(xq.astype(jnp.bfloat16))

        # One long-K bf16 matmul instead of 4 small ones; pieces are 16-sublane
        # aligned so the concat is vreg-boundary clean.
        xcat = jnp.concatenate(pieces, axis=0)                     # (KTOT, TM) bf16
        acc = jnp.dot(w_ref[...], xcat,                            # (COUT_SUB, TM) f32
                      preferred_element_type=jnp.float32)
        out_ref[...] = acc + b_ref[...]                            # single pre-summed bias

    return kernel


# ------------------------------ JAX wrapper ----------------------------------
def dual_core_layer_forward(x_nchw, w_raw, bias, outer_alpha, base_alpha,
                            temperature=1.0, tile_rows=1024):
    N, Cin, H, W = x_nchw.shape
    Cout = w_raw.shape[-1]

    # --- fold search coefficients into weights / bias (tiny tensors, wrapper-side) ---
    coef = compute_coefficients(outer_alpha, base_alpha, temperature).astype(jnp.float32)  # [5]
    w_q = quantize_weights(w_raw)                                          # [P,3,3,Cin,Cout]
    w_eff = coef[:, None, None, None, None] * w_q                          # coef folded into weights
    b_eff = (coef[:, None] * bias.astype(jnp.float32)).sum(axis=0)         # [Cout] pre-summed bias

    # Merge fp32+fp16 (identity activation path) -> 4 distinct activation branches.
    i_fp32, i_fp16 = PRECISIONS.index("fp32"), PRECISIONS.index("fp16")
    int_idx = [PRECISIONS.index(n) for n in PRECISIONS if n.startswith("int")]
    branches = [w_eff[i_fp32] + w_eff[i_fp16]] + [w_eff[i] for i in int_idx]
    B = len(branches)                                                      # 4

    # Transposed, lane-dense layout: K on sublanes (pad to 16), Cout on sublanes
    # (pad to 16 -- not 128 lanes), rows on the 128-lane axis.
    K = KH * KW * Cin
    K_pad = _round_up(K, 16)                                               # bf16-sublane-aligned pieces
    KTOT = B * K_pad
    COUT_SUB = _round_up(Cout, 16)

    w_cols = []
    for wb in branches:
        wm = wb.reshape(K, Cout)
        wm = jnp.pad(wm, ((0, K_pad - K), (0, COUT_SUB - Cout)))
        w_cols.append(wm.T)                                                # (COUT_SUB, K_pad)
    w_fused = jnp.concatenate(w_cols, axis=1).astype(jnp.bfloat16)         # (COUT_SUB, KTOT) bf16
    b_mat = jnp.pad(b_eff, (0, COUT_SUB - Cout)).reshape(COUT_SUB, 1)      # (COUT_SUB, 1) f32

    # --- im2col once; pad lanes/rows are 0 and 0 is a fixed point of every quantizer ---
    x_nhwc = jnp.transpose(x_nchw, (0, 2, 3, 1)).astype(jnp.float32)
    xpad = jnp.pad(x_nhwc, ((0, 0), (1, 1), (1, 1), (0, 0)))               # SAME for 3x3 / stride 1
    cols = [xpad[:, kh:kh + H, kw:kw + W, :] for kh in range(KH) for kw in range(KW)]
    rows = N * H * W
    patches = jnp.concatenate(cols, axis=-1).reshape(rows, K)              # [rows, 9*Cin]

    # Row tile: multiple of 128 (lane axis), big by default, but keep grid >= 2
    # when there is enough work so v7x's two TensorCores both get a share.
    rows_128 = _round_up(rows, 128)
    TM = min(_round_up(max(tile_rows, 128), 128), rows_128)
    if rows_128 // TM < 2 and rows_128 >= 256:
        TM = _round_up(rows_128 // 2, 128)
    rows_p = _round_up(rows, TM)
    grid = (rows_p // TM,)

    # Patches stay f32 in HBM (exact quant-level selection); quantized pieces are
    # cast to bf16 inside the kernel for the MXU.
    patches_t = jnp.pad(patches, ((0, rows_p - rows), (0, K_pad - K))).T   # (K_pad, rows_p) f32

    kernel = make_dual_core_kernel(make_int_branch_specs())

    out_t = pl.pallas_call(
        kernel,
        out_shape=jax.ShapeDtypeStruct((COUT_SUB, rows_p), jnp.float32),
        grid_spec=pltpu.PrefetchScalarGridSpec(
            num_scalar_prefetch=0,
            grid=grid,
            in_specs=[
                pl.BlockSpec((K_pad, TM), lambda i: (0, i)),               # streamed im2col^T tile
                pl.BlockSpec((COUT_SUB, KTOT), lambda i: (0, 0)),          # fused bf16 weights (resident)
                pl.BlockSpec((COUT_SUB, 1), lambda i: (0, 0)),             # fused bias
            ],
            out_specs=pl.BlockSpec((COUT_SUB, TM), lambda i: (0, i)),      # lane-dense out^T slab
        ),
        compiler_params=pltpu.CompilerParams(
            dimension_semantics=("parallel",),                             # megacore-shard row tiles (v7x)
            vmem_limit_bytes=48 * 1024 * 1024,                             # safe on v7x's 64 MiB VMEM
        ),
    )(patches_t, w_fused, b_mat)

    out = out_t[:Cout, :rows].reshape(Cout, N, H, W)
    return jnp.transpose(out, (1, 0, 2, 3))                                # back to NCHW


# ------------------------- pure-JAX reference (check) -------------------------
def reference_forward(x_nchw, w_raw, bias, outer_alpha, base_alpha, temperature=1.0):
    coef = compute_coefficients(outer_alpha, base_alpha, temperature)
    w_q = quantize_weights(w_raw)
    x = jnp.transpose(x_nchw, (0, 2, 3, 1)).astype(jnp.float32)
    out = 0.0
    for p, name in enumerate(PRECISIONS):
        if name.startswith("int"):
            bits = int(name[3:])
            a = PACT_INIT[name]
            s = a / (2.0 ** bits - 1.0)
            xq = jnp.round(jnp.clip(x, 0.0, a) / s) * s
        else:
            # TODO(synk): fp16 activation rounding not emulated (identity path), matching the kernel.
            xq = x
        y = jax.lax.conv_general_dilated(
            xq, w_q[p], window_strides=(1, 1), padding="SAME",
            dimension_numbers=("NHWC", "HWIO", "NHWC"),
            precision=jax.lax.Precision.HIGHEST)
        out = out + coef[p] * (y + bias[p][None, None, None, :])
    return jnp.transpose(out, (0, 3, 1, 2))


if __name__ == "__main__":
    N, Cin, H, W, Cout = 2, 4, 16, 16, 8

    key = jax.random.PRNGKey(0)
    k_x, k_w, k_b, k_a = jax.random.split(key, 4)
    x = jax.random.normal(k_x, (N, Cin, H, W), jnp.float32)                    # NCHW input
    w_raw = jax.random.normal(k_w, (P, KH, KW, Cin, Cout), jnp.float32) * 0.1  # per-precision conv weights
    bias = jax.random.normal(k_b, (P, Cout), jnp.float32) * 0.1
    base_alpha = jax.random.normal(k_a, (P,), jnp.float32) * 0.5               # base layer's learned alpha
    outer_alpha = jnp.zeros((len(get_dual_core_options()),), jnp.float32)      # DualCoreLayer alpha init

    out = dual_core_layer_forward(x, w_raw, bias, outer_alpha, base_alpha)
    out = jax.block_until_ready(out)

    ref = reference_forward(x, w_raw, bias, outer_alpha, base_alpha)
    np.testing.assert_allclose(np.asarray(out), np.asarray(ref), rtol=2e-2, atol=2e-2)

    assert out.shape == (N, Cout, H, W)
    print("KERNEL_OK")
</pallas_src>

<mosaic_0001>
module attributes {stable_mosaic.version = 11 : i64} {
  func.func @kernel(%arg0: i32, %arg1: memref<48x256xf32, #tpu.memory_space<vmem>>, %arg2: memref<16x192xbf16, #tpu.memory_space<vmem>>, %arg3: memref<16x1xf32, #tpu.memory_space<vmem>>, %arg4: memref<16x256xf32, #tpu.memory_space<vmem>>) attributes {dimension_semantics = [#tpu.dimension_semantics<parallel>], iteration_bounds = array<i64: 2>, scalar_prefetch = 0 : i64, scratch_operands = 0 : i64, tpu.core_type = #tpu.core_type<tc>, window_params = [{transform_indices = @transform_0, window_bounds = array<i64: 48, 256>}, {pipeline_mode = #tpu.pipeline_mode<synchronous>, transform_indices = @transform_1, window_bounds = array<i64: 16, 192>}, {pipeline_mode = #tpu.pipeline_mode<synchronous>, transform_indices = @transform_2, window_bounds = array<i64: 16, 1>}, {transform_indices = @transform_3, window_bounds = array<i64: 16, 256>}]} {
    %c0 = arith.constant 0 : index
    %c0_0 = arith.constant 0 : index
    %0 = vector.load %arg1[%c0, %c0_0] : memref<48x256xf32, #tpu.memory_space<vmem>>, vector<48x256xf32>
    %cst = arith.constant 0.000000e+00 : f32
    %1 = vector.broadcast %cst : f32 to vector<48x256xf32>
    %2 = arith.maximumf %0, %1 : vector<48x256xf32>
    %3 = arith.truncf %0 : vector<48x256xf32> to vector<48x256xbf16>
    %cst_1 = arith.constant 6.000000e+00 : f32
    %4 = vector.broadcast %cst_1 : f32 to vector<48x256xf32>
    %5 = arith.minimumf %2, %4 : vector<48x256xf32>
    %cst_2 = arith.constant 4.250000e+01 : f32
    %6 = vector.broadcast %cst_2 : f32 to vector<48x256xf32>
    %7 = arith.mulf %5, %6 : vector<48x256xf32>
    %8 = math.roundeven %7 : vector<48x256xf32>
    %cst_3 = arith.constant 0.0235294122 : f32
    %9 = vector.broadcast %cst_3 : f32 to vector<48x256xf32>
    %10 = arith.mulf %8, %9 : vector<48x256xf32>
    %11 = arith.truncf %10 : vector<48x256xf32> to vector<48x256xbf16>
    %cst_4 = arith.constant 4.000000e+00 : f32
    %12 = vector.broadcast %cst_4 : f32 to vector<48x256xf32>
    %13 = arith.minimumf %2, %12 : vector<48x256xf32>
    %cst_5 = arith.constant 3.750000e+00 : f32
    %14 = vector.broadcast %cst_5 : f32 to vector<48x256xf32>
    %15 = arith.mulf %13, %14 : vector<48x256xf32>
    %16 = math.roundeven %15 : vector<48x256xf32>
    %cst_6 = arith.constant 0.266666681 : f32
    %17 = vector.broadcast %cst_6 : f32 to vector<48x256xf32>
    %18 = arith.mulf %16, %17 : vector<48x256xf32>
    %19 = arith.truncf %18 : vector<48x256xf32> to vector<48x256xbf16>
    %cst_7 = arith.constant 2.000000e+00 : f32
    %20 = vector.broadcast %cst_7 : f32 to vector<48x256xf32>
    %21 = arith.minimumf %2, %20 : vector<48x256xf32>
    %cst_8 = arith.constant 1.500000e+00 : f32
    %22 = vector.broadcast %cst_8 : f32 to vector<48x256xf32>
    %23 = arith.mulf %21, %22 : vector<48x256xf32>
    %24 = math.roundeven %23 : vector<48x256xf32>
    %cst_9 = arith.constant 0.666666686 : f32
    %25 = vector.broadcast %cst_9 : f32 to vector<48x256xf32>
    %26 = arith.mulf %24, %25 : vector<48x256xf32>
    %27 = arith.truncf %26 : vector<48x256xf32> to vector<48x256xbf16>
    %28 = tpu.concatenate %3, %11, %19, %27 in 0 : vector<48x256xbf16>, vector<48x256xbf16>, vector<48x256xbf16>, vector<48x256xbf16> -> vector<192x256xbf16>
    %c0_10 = arith.constant 0 : index
    %c0_11 = arith.constant 0 : index
    %29 = vector.load %arg2[%c0_10, %c0_11] : memref<16x192xbf16, #tpu.memory_space<vmem>>, vector<16x192xbf16>
    %cst_12 = arith.constant dense<0.000000e+00> : vector<16x256xf32>
    %30 = tpu.matmul %29, %28, %cst_12 {dimension_numbers = #tpu.dot_dimension_numbers<[1], [0], [0], [1], [0, 0, 1, 1], [], []>} : vector<16x192xbf16>, vector<192x256xbf16>, vector<16x256xf32> -> vector<16x256xf32>
    %c0_13 = arith.constant 0 : index
    %c0_14 = arith.constant 0 : index
    %31 = vector.load %arg3[%c0_13, %c0_14] : memref<16x1xf32, #tpu.memory_space<vmem>>, vector<16x1xf32>
    %32 = vector.broadcast %31 : vector<16x1xf32> to vector<16x256xf32>
    %33 = arith.addf %30, %32 : vector<16x256xf32>
    %c0_15 = arith.constant 0 : index
    %c0_16 = arith.constant 0 : index
    %34 = vector.load %arg4[%c0_15, %c0_16] : memref<16x256xf32, #tpu.memory_space<vmem>>, vector<16x256xf32>
    tpu.vector_store %arg4[%c0_15, %c0_16], %33 {strides = array<i32>} : memref<16x256xf32, #tpu.memory_space<vmem>>, vector<16x256xf32>,
    return
  }
  func.func @transform_0(%arg0: i32) -> (i32, i32) {
    %c0_i32 = arith.constant 0 : i32
    %c0_i32_0 = arith.constant 0 : i32
    return %c0_i32, %arg0 : i32, i32
  }
  func.func @transform_1(%arg0: i32) -> (i32, i32) {
    %c0_i32 = arith.constant 0 : i32
    %c0_i32_0 = arith.constant 0 : i32
    %c0_i32_1 = arith.constant 0 : i32
    return %c0_i32, %c0_i32_0 : i32, i32
  }
  func.func @transform_2(%arg0: i32) -> (i32, i32) {
    %c0_i32 = arith.constant 0 : i32
    %c0_i32_0 = arith.constant 0 : i32
    %c0_i32_1 = arith.constant 0 : i32
    return %c0_i32, %c0_i32_0 : i32, i32
  }
  func.func @transform_3(%arg0: i32) -> (i32, i32) {
    %c0_i32 = arith.constant 0 : i32
    %c0_i32_0 = arith.constant 0 : i32
    return %c0_i32, %arg0 : i32, i32
  }
}

</mosaic_0001>

<llo_original>
// kernel: tpu_custom_call.1
$region0: #{tpu_custom_call.1}
  #allocation0 [shape = 'u32[]', space=smem, size = 0x4, offset = 0x4, fixed_abs, tag = 'smem constant byte address 0x4 - core index']
  #allocation1 [shape = 'u32[144,128]{1,0:T(1,128)}', space=vmem, size = 0x12000, scoped, tag = 'internal scratch']
  %s0 = inlined_call_operand.hbm [shape: f32[48,512], index: 0, kind: input, shape index: {}]
  %s1 = inlined_call_operand.vmem [shape: bf16[16,192], index: 1, kind: input, shape index: {}]
  %s2 = inlined_call_operand.vmem [shape: f32[16,1], index: 2, kind: input, shape index: {}]
  %s3 = inlined_call_operand.hbm [shape: f32[16,512], index: 3, kind: output, shape index: {}]
  %s4 = sld [smem:[#allocation0]]
  $region49: #{tpu_custom_call.1} parent=0
    _
  %s6 = ssub.s32 1, %s4
  %s7 = scalar_select 0, %s6, %s4
  $region1: #{tpu_custom_call.1} parent=0
    #allocation2 [shape = 'u8[98304]{0}', space=vmem, size = 0x18000, scoped, tag = 'input window, operand 0']
    #allocation3 [shape = 's32[2]{0}', space=sflag, size = 0x8, scoped, tag = 'scoped memory for tpu_custom_call.1']
    #allocation4 [shape = 's32[2]{0}', space=sflag, size = 0x8, scoped, tag = 'scoped memory for tpu_custom_call.1']
    #allocation5 [shape = 'u8[32768]{0}', space=vmem, size = 0x8000, scoped, tag = 'output window, operand 0']
    %8 = vsyncpa [#allocation3], 0
    %s9 = scalar_lea.sflag [#allocation3], 1
    %10 = vsyncpa %s9, 0
    %11 = vsyncpa [#allocation4], 0
    %s12 = scalar_lea.sflag [#allocation4], 1
    %13 = vsyncpa %s12, 0
    loop: start=0, step=1, limit=4
    $region2: #{tpu_custom_call.1} parent=1 // loop_pre_header
      _
    $region3: #{tpu_custom_call.1} parent=1 // loop_header
      %s15 = sphi 0, %s19
      %p16 = scmp.ge.s32.totalorder %s15, 4
      %s25 = sphi 0, %s27
      %s28 = sphi 0, %s25
      %s29 = sphi 0, %s28
      %s45 = sphi 0, %s29
      %s49 = sphi 0, %s49
      %s51 = sphi 0, %s49
      %s52 = sphi 0, %s51
      %s66 = sphi 0, %s52
      %s70 = sphi 0, %s70
      %s72 = sphi 0, %s70
      %s73 = sphi 0, %s72
      %s87 = sphi 0, %s73
      %s93 = sphi 0, %s95
      %s96 = sphi 0, %s93
      %s97 = sphi 0, %s96
      %s113 = sphi 0, %s97
    $region4: #{tpu_custom_call.1} parent=1 // loop_header_branch
      %18 = sbr.rel (%p16) target = $region8
    $region5: #{tpu_custom_call.1} parent=1 // loop_body
      %s20 = ssub.s32 %s15, 1
      %s21 = ssub.s32 %s15, 2
      %s22 = sadd.s32 %s15, 1
      %s23 = ssub.s32 %s15, %s22
      %p24 = scmp.eq.s32.totalorder %s23, 0
      %s26 = sadd.s32 %s25, 1
      %s27 = scalar_select %p24, %s25, %s26
      %p30 = pneg %p24
      %p31 = scmp.eq.s32.totalorder %s15, 1
      %p32 = por %p30, %p31
      %p33 = scmp.ne.s32.totalorder %s25, %s28
      %p34 = scmp.eq.s32.totalorder %s15, 0
      %p35 = por %p33, %p34
      %p36 = scmp.ne.s32.totalorder %s25, %s28
      %p37 = scmp.eq.s32.totalorder %s20, 1
      %p38 = por %p36, %p37
      %p39 = scmp.ne.s32.totalorder %s28, %s29
      %p40 = scmp.eq.s32.totalorder %s20, 0
      %p41 = por %p39, %p40
      %p42 = scmp.ne.s32.totalorder %s28, %s29
      %p43 = scmp.eq.s32.totalorder %s21, 1
      %p44 = por %p42, %p43
      %p46 = scmp.ne.s32.totalorder %s29, %s45
      %p47 = scmp.eq.s32.totalorder %s21, 0
      %p48 = por %p46, %p47
      %s50 = sadd.s32 %s49, 1
      %p53 = scmp.eq.s32.totalorder %s15, 1
      %p54 = scmp.ne.s32.totalorder %s49, %s51
      %p55 = scmp.eq.s32.totalorder %s15, 0
      %p56 = por %p54, %p55
      %p57 = scmp.ne.s32.totalorder %s49, %s51
      %p58 = scmp.eq.s32.totalorder %s20, 1
      %p59 = por %p57, %p58
      %p60 = scmp.ne.s32.totalorder %s51, %s52
      %p61 = scmp.eq.s32.totalorder %s20, 0
      %p62 = por %p60, %p61
      %p63 = scmp.ne.s32.totalorder %s51, %s52
      %p64 = scmp.eq.s32.totalorder %s21, 1
      %p65 = por %p63, %p64
      %p67 = scmp.ne.s32.totalorder %s52, %s66
      %p68 = scmp.eq.s32.totalorder %s21, 0
      %p69 = por %p67, %p68
      %s71 = sadd.s32 %s70, 1
      %p74 = scmp.eq.s32.totalorder %s15, 1
      %p75 = scmp.ne.s32.totalorder %s70, %s72
      %p76 = scmp.eq.s32.totalorder %s15, 0
      %p77 = por %p75, %p76
      %p78 = scmp.ne.s32.totalorder %s70, %s72
      %p79 = scmp.eq.s32.totalorder %s20, 1
      %p80 = por %p78, %p79
      %p81 = scmp.ne.s32.totalorder %s72, %s73
      %p82 = scmp.eq.s32.totalorder %s20, 0
      %p83 = por %p81, %p82
      %p84 = scmp.ne.s32.totalorder %s72, %s73
      %p85 = scmp.eq.s32.totalorder %s21, 1
      %p86 = por %p84, %p85
      %p88 = scmp.ne.s32.totalorder %s73, %s87
      %p89 = scmp.eq.s32.totalorder %s21, 0
      %p90 = por %p88, %p89
      %s91 = ssub.s32 %s15, %s22
      %p92 = scmp.eq.s32.totalorder %s91, 0
      %s94 = sadd.s32 %s93, 1
      %s95 = scalar_select %p92, %s93, %s94
      %p98 = pneg %p92
      %p99 = scmp.eq.s32.totalorder %s15, 1
      %p100 = por %p98, %p99
      %p101 = scmp.ne.s32.totalorder %s93, %s96
      %p102 = scmp.eq.s32.totalorder %s15, 0
      %p103 = por %p101, %p102
      %p104 = scmp.ne.s32.totalorder %s93, %s96
      %p105 = scmp.eq.s32.totalorder %s20, 1
      %p106 = por %p104, %p105
      %p107 = scmp.ne.s32.totalorder %s96, %s97
      %p108 = scmp.eq.s32.totalorder %s20, 0
      %p109 = por %p107, %p108
      %p110 = scmp.ne.s32.totalorder %s96, %s97
      %p111 = scmp.eq.s32.totalorder %s21, 1
      %p112 = por %p110, %p111
      %p114 = scmp.ne.s32.totalorder %s97, %s113
      %p115 = scmp.eq.s32.totalorder %s21, 0
      %p116 = por %p114, %p115
      %p117 = scmp.le.s32.totalorder 1, %s15
      %p118 = scmp.lt.s32.totalorder %s15, 3
      %p119 = pnand %p117, %p118
      %p120 = pneg %p119
      // Predicated region
      $region9: #{tpu_custom_call.1} parent=5 // pred_check
        _
      $region10: #{tpu_custom_call.1} parent=5 // pred_check_branch
        %122 = sbr.rel (%p119) target = $region12
      $region11: #{tpu_custom_call.1} parent=5 // pred_region
        %s123 = ssub.s32 %s15, 1
        // Predicated region
        $region13: #{tpu_custom_call.1} parent=11 // pred_check
          %p124 = pneg %p62
        $region14: #{tpu_custom_call.1} parent=11 // pred_check_branch
          %126 = sbr.rel (%p124) target = $region16
        $region15: #{tpu_custom_call.1} parent=11 // pred_region
          _
        $region16: #{tpu_custom_call.1} parent=11 // pred_fallthru
          _
        // Predicated region
        $region17: #{tpu_custom_call.1} parent=11 // pred_check
          %p127 = pneg %p83
        $region18: #{tpu_custom_call.1} parent=11 // pred_check_branch
          %129 = sbr.rel (%p127) target = $region20
        $region19: #{tpu_custom_call.1} parent=11 // pred_region
          _
        $region20: #{tpu_custom_call.1} parent=11 // pred_fallthru
          _
      $region12: #{tpu_custom_call.1} parent=5 // pred_fallthru
        _
      %p130 = scmp.lt.s32.totalorder %s15, 2
      // Predicated region
      $region21: #{tpu_custom_call.1} parent=5 // pred_check
        %p131 = pneg %p130
      $region22: #{tpu_custom_call.1} parent=5 // pred_check_branch
        %133 = sbr.rel (%p131) target = $region24
      $region23: #{tpu_custom_call.1} parent=5 // pred_region
        // Predicated region
        $region25: #{tpu_custom_call.1} parent=23 // pred_check
          %p134 = pneg %p35
        $region26: #{tpu_custom_call.1} parent=23 // pred_check_branch
          %136 = sbr.rel (%p134) target = $region28
        $region27: #{tpu_custom_call.1} parent=23 // pred_region
          %s137 = sand.u32 %s25, 1
          %s138 = scalar_lea.sflag [#allocation3], %s137
          %s139 = sand.u32 %s25, 1
          %s140 = smul.addr %s139, 96
          %s141 = scalar_lea.vmem [#allocation2], %s140
          %s142 = smul.u32 2, %s15
          %s144 = ssub.s32 1536, 1536
          %145 = vsyncadd %s138, %s144
          %s146 = smul.addr %s142, 128
          %s147 = scalar_lea.hbm %s0, %s146
          %s148 = sshll.u32 %s141, 4
          %s149 = int_to_ptr.vmem [resolvable:$true] %s148
          %154 = dma.hbm_to_vmem [thread:$0]  %s147, 1536, %s149, %s138, 512, 256, 16
        $region28: #{tpu_custom_call.1} parent=23 // pred_fallthru
          _
      $region24: #{tpu_custom_call.1} parent=5 // pred_fallthru
        _
      %p155 = scmp.le.s32.totalorder 1, %s15
      %p156 = scmp.lt.s32.totalorder %s15, 3
      %p157 = pnand %p155, %p156
      %p158 = pneg %p157
      // Predicated region
      $region29: #{tpu_custom_call.1} parent=5 // pred_check
        _
      $region30: #{tpu_custom_call.1} parent=5 // pred_check_branch
        %160 = sbr.rel (%p157) target = $region32
      $region31: #{tpu_custom_call.1} parent=5 // pred_region
        %s161 = ssub.s32 %s15, 1
        %s162 = sand.u32 %s28, 1
        %s163 = scalar_lea.sflag [#allocation3], %s162
        %s164 = sand.u32 %s28, 1
        %s165 = smul.addr %s164, 96
        %s166 = scalar_lea.vmem [#allocation2], %s165
        // Predicated region
        $region33: #{tpu_custom_call.1} parent=31 // pred_check
          %p167 = pneg %p41
        $region34: #{tpu_custom_call.1} parent=31 // pred_check_branch
          %169 = sbr.rel (%p167) target = $region36
        $region35: #{tpu_custom_call.1} parent=31 // pred_region
          %170 = dma.done %s163, 1536
        $region36: #{tpu_custom_call.1} parent=31 // pred_fallthru
          _
        %s171 = sand.u32 %s28, 1
        %s172 = scalar_lea.sflag [#allocation3], %s171
        %s173 = sand.u32 %s28, 1
        %s174 = smul.addr %s173, 96
        %s175 = scalar_lea.vmem [#allocation2], %s174
        %p176 = pneg %p41
        %p177 = pneg %p38
        %p178 = pneg %p62
        %p179 = pneg %p59
        %p180 = pneg %p83
        %p181 = pneg %p80
        %p182 = pneg %p109
        %p183 = pneg %p106
        %s184 = sand.u32 %s96, 1
        %s185 = scalar_lea.sflag [#allocation4], %s184
        %s186 = sand.u32 %s96, 1
        %s187 = smul.addr %s186, 32
        %s188 = scalar_lea.vmem [#allocation5], %s187
        %s189 = smul.u32 2, %s20
        %s190 = smul.u32 2, %s20
        %v192 = vld [vmem:[%s166] sm:$0xff]
        %v193 = vld [vmem:[%s166 + $0x8] sm:$0xff]
        %v194 = vld [vmem:[%s166 + $0x10] sm:$0xff]
        %v195 = vld [vmem:[%s166 + $0x18] sm:$0xff]
        %v196 = vld [vmem:[%s166 + $0x20] sm:$0xff]
        %v197 = vld [vmem:[%s166 + $0x28] sm:$0xff]
        %v198 = vld [vmem:[%s166 + $0x30] sm:$0xff]
        %v199 = vld [vmem:[%s166 + $0x38] sm:$0xff]
        %v200 = vld [vmem:[%s166 + $0x40] sm:$0xff]
        %v201 = vld [vmem:[%s166 + $0x48] sm:$0xff]
        %v202 = vld [vmem:[%s166 + $0x50] sm:$0xff]
        %v203 = vld [vmem:[%s166 + $0x58] sm:$0xff]
        %v204 = vmax.f32 %v192, 0.0
        %v205 = vmax.f32 %v193, 0.0
        %v206 = vmax.f32 %v194, 0.0
        %v207 = vmax.f32 %v195, 0.0
        %v208 = vmax.f32 %v196, 0.0
        %v209 = vmax.f32 %v197, 0.0
        %v210 = vmax.f32 %v198, 0.0
        %v211 = vmax.f32 %v199, 0.0
        %v212 = vmax.f32 %v200, 0.0
        %v213 = vmax.f32 %v201, 0.0
        %v214 = vmax.f32 %v202, 0.0
        %v215 = vmax.f32 %v203, 0.0
        %v216 = vpack.c.bf16 %v194, %v192
        %v217 = vpack.c.bf16 %v195, %v193
        %v218 = vpack.c.bf16 %v198, %v196
        %v219 = vpack.c.bf16 %v199, %v197
        %v220 = vpack.c.bf16 %v202, %v200
        %v221 = vpack.c.bf16 %v203, %v201
        %v222 = vmin.f32 %v204, 6.0
        %v223 = vmin.f32 %v205, 6.0
        %v224 = vmin.f32 %v206, 6.0
        %v225 = vmin.f32 %v207, 6.0
        %v226 = vmin.f32 %v208, 6.0
        %v227 = vmin.f32 %v209, 6.0
        %v228 = vmin.f32 %v210, 6.0
        %v229 = vmin.f32 %v211, 6.0
        %v230 = vmin.f32 %v212, 6.0
        %v231 = vmin.f32 %v213, 6.0
        %v232 = vmin.f32 %v214, 6.0
        %v233 = vmin.f32 %v215, 6.0
        %v234 = vmul.f32 %v222, 42.5
        %v235 = vmul.f32 %v223, 42.5
        %v236 = vmul.f32 %v224, 42.5
        %v237 = vmul.f32 %v225, 42.5
        %v238 = vmul.f32 %v226, 42.5
        %v239 = vmul.f32 %v227, 42.5
        %v240 = vmul.f32 %v228, 42.5
        %v241 = vmul.f32 %v229, 42.5
        %v242 = vmul.f32 %v230, 42.5
        %v243 = vmul.f32 %v231, 42.5
        %v244 = vmul.f32 %v232, 42.5
        %v245 = vmul.f32 %v233, 42.5
        %v246 = vround.ne.pseudo %v234
        %v247 = vround.ne.pseudo %v235
        %v248 = vround.ne.pseudo %v236
        %v249 = vround.ne.pseudo %v237
        %v250 = vround.ne.pseudo %v238
        %v251 = vround.ne.pseudo %v239
        %v252 = vround.ne.pseudo %v240
        %v253 = vround.ne.pseudo %v241
        %v254 = vround.ne.pseudo %v242
        %v255 = vround.ne.pseudo %v243
        %v256 = vround.ne.pseudo %v244
        %v257 = vround.ne.pseudo %v245
        %v258 = vmul.f32 %v246, 0.023529412
        %v259 = vmul.f32 %v247, 0.023529412
        %v260 = vmul.f32 %v248, 0.023529412
        %v261 = vmul.f32 %v249, 0.023529412
        %v262 = vmul.f32 %v250, 0.023529412
        %v263 = vmul.f32 %v251, 0.023529412
        %v264 = vmul.f32 %v252, 0.023529412
        %v265 = vmul.f32 %v253, 0.023529412
        %v266 = vmul.f32 %v254, 0.023529412
        %v267 = vmul.f32 %v255, 0.023529412
        %v268 = vmul.f32 %v256, 0.023529412
        %v269 = vmul.f32 %v257, 0.023529412
        %v270 = vpack.c.bf16 %v260, %v258
        %v271 = vpack.c.bf16 %v261, %v259
        %v272 = vpack.c.bf16 %v264, %v262
        %v273 = vpack.c.bf16 %v265, %v263
        %v274 = vpack.c.bf16 %v268, %v266
        %v275 = vpack.c.bf16 %v269, %v267
        %v276 = vmin.f32 %v204, 4.0
        %v277 = vmin.f32 %v205, 4.0
        %v278 = vmin.f32 %v206, 4.0
        %v279 = vmin.f32 %v207, 4.0
        %v280 = vmin.f32 %v208, 4.0
        %v281 = vmin.f32 %v209, 4.0
        %v282 = vmin.f32 %v210, 4.0
        %v283 = vmin.f32 %v211, 4.0
        %v284 = vmin.f32 %v212, 4.0
        %v285 = vmin.f32 %v213, 4.0
        %v286 = vmin.f32 %v214, 4.0
        %v287 = vmin.f32 %v215, 4.0
        %v288 = vmul.f32 %v276, 3.75
        %v289 = vmul.f32 %v277, 3.75
        %v290 = vmul.f32 %v278, 3.75
        %v291 = vmul.f32 %v279, 3.75
        %v292 = vmul.f32 %v280, 3.75
        %v293 = vmul.f32 %v281, 3.75
        %v294 = vmul.f32 %v282, 3.75
        %v295 = vmul.f32 %v283, 3.75
        %v296 = vmul.f32 %v284, 3.75
        %v297 = vmul.f32 %v285, 3.75
        %v298 = vmul.f32 %v286, 3.75
        %v299 = vmul.f32 %v287, 3.75
        %v300 = vround.ne.pseudo %v288
        %v301 = vround.ne.pseudo %v289
        %v302 = vround.ne.pseudo %v290
        %v303 = vround.ne.pseudo %v291
        %v304 = vround.ne.pseudo %v292
        %v305 = vround.ne.pseudo %v293
        %v306 = vround.ne.pseudo %v294
        %v307 = vround.ne.pseudo %v295
        %v308 = vround.ne.pseudo %v296
        %v309 = vround.ne.pseudo %v297
        %v310 = vround.ne.pseudo %v298
        %v311 = vround.ne.pseudo %v299
        %v312 = vmul.f32 %v300, 0.26666668
        %v313 = vmul.f32 %v301, 0.26666668
        %v314 = vmul.f32 %v302, 0.26666668
        %v315 = vmul.f32 %v303, 0.26666668
        %v316 = vmul.f32 %v304, 0.26666668
        %v317 = vmul.f32 %v305, 0.26666668
        %v318 = vmul.f32 %v306, 0.26666668
        %v319 = vmul.f32 %v307, 0.26666668
        %v320 = vmul.f32 %v308, 0.26666668
        %v321 = vmul.f32 %v309, 0.26666668
        %v322 = vmul.f32 %v310, 0.26666668
        %v323 = vmul.f32 %v311, 0.26666668
        %v324 = vpack.c.bf16 %v314, %v312
        %v325 = vpack.c.bf16 %v315, %v313
        %v326 = vpack.c.bf16 %v318, %v316
        %v327 = vpack.c.bf16 %v319, %v317
        %v328 = vpack.c.bf16 %v322, %v320
        %v329 = vpack.c.bf16 %v323, %v321
        %v330 = vmin.f32 %v204, 2.0
        %v331 = vmin.f32 %v205, 2.0
        %v332 = vmin.f32 %v206, 2.0
        %v333 = vmin.f32 %v207, 2.0
        %v334 = vmin.f32 %v208, 2.0
        %v335 = vmin.f32 %v209, 2.0
        %v336 = vmin.f32 %v210, 2.0
        %v337 = vmin.f32 %v211, 2.0
        %v338 = vmin.f32 %v212, 2.0
        %v339 = vmin.f32 %v213, 2.0
        %v340 = vmin.f32 %v214, 2.0
        %v341 = vmin.f32 %v215, 2.0
        %v342 = vmul.f32 %v330, 1.5
        %v343 = vmul.f32 %v331, 1.5
        %v344 = vmul.f32 %v332, 1.5
        %v345 = vmul.f32 %v333, 1.5
        %v346 = vmul.f32 %v334, 1.5
        %v347 = vmul.f32 %v335, 1.5
        %v348 = vmul.f32 %v336, 1.5
        %v349 = vmul.f32 %v337, 1.5
        %v350 = vmul.f32 %v338, 1.5
        %v351 = vmul.f32 %v339, 1.5
        %v352 = vmul.f32 %v340, 1.5
        %v353 = vmul.f32 %v341, 1.5
        %v354 = vround.ne.pseudo %v342
        %v355 = vround.ne.pseudo %v343
        %v356 = vround.ne.pseudo %v344
        %v357 = vround.ne.pseudo %v345
        %v358 = vround.ne.pseudo %v346
        %v359 = vround.ne.pseudo %v347
        %v360 = vround.ne.pseudo %v348
        %v361 = vround.ne.pseudo %v349
        %v362 = vround.ne.pseudo %v350
        %v363 = vround.ne.pseudo %v351
        %v364 = vround.ne.pseudo %v352
        %v365 = vround.ne.pseudo %v353
        %v366 = vmul.f32 %v354, 0.6666667
        %v367 = vmul.f32 %v355, 0.6666667
        %v368 = vmul.f32 %v356, 0.6666667
        %v369 = vmul.f32 %v357, 0.6666667
        %v370 = vmul.f32 %v358, 0.6666667
        %v371 = vmul.f32 %v359, 0.6666667
        %v372 = vmul.f32 %v360, 0.6666667
        %v373 = vmul.f32 %v361, 0.6666667
        %v374 = vmul.f32 %v362, 0.6666667
        %v375 = vmul.f32 %v363, 0.6666667
        %v376 = vmul.f32 %v364, 0.6666667
        %v377 = vmul.f32 %v365, 0.6666667
        %v378 = vpack.c.bf16 %v368, %v366
        %v379 = vpack.c.bf16 %v369, %v367
        %v380 = vpack.c.bf16 %v372, %v370
        %v381 = vpack.c.bf16 %v373, %v371
        %v382 = vpack.c.bf16 %v376, %v374
        %v383 = vpack.c.bf16 %v377, %v375
        %v384 = vld [vmem:[%s1] sm:$0xff]
        %v385 = vld [vmem:[%s1 + $0x8] sm:$0xff]
        %v386 = vld [vmem:[%s2] sm:$0xff]
        %v387 = vld [vmem:[%s2 + $0x8] sm:$0xff]
        %389 = vset.pattern.permute.xlu0 0
        %390 = vperm.xlu0 %389, %v386
        %v391 = vpop.permute.xlu0 %390
        %394 = vset.pattern.permute.xlu0 0
        %395 = vperm.xlu0 %394, %v387
        %v396 = vpop.permute.xlu0 %395
        %v400 = vunpack.c.l.b16 %v384
        %v401 = vunpack.c.h.b16 %v384
        %v402 = vunpack.c.l.b16 %v385
        %v403 = vunpack.c.h.b16 %v385
        %v404 = vpack.c.b16 %v402, %v400
        %v405 = vpack.c.b16 %v403, %v401
        %vm407 = vcmask 523264
        %v409 = vsel %vm407, %v405, 0
        %411 = vmatprep.subr.bf16.mxu0 %v217
        %412 = vmatpush1.bf16.msra.mxu0 %v216
        %413 = vmatprep.subr.bf16.mxu0 %v219
        %414 = vmatpush1.bf16.msra.mxu0 %v218
        %415 = vmatprep.subr.bf16.mxu0 %v221
        %416 = vmatpush1.bf16.msra.mxu0 %v220
        %417 = vmatprep.subr.bf16.mxu0 %v271
        %418 = vmatpush1.bf16.msra.mxu0 %v270
        %419 = vmatprep.subr.bf16.mxu0 %v273
        %420 = vmatpush1.bf16.msra.mxu0 %v272
        %421 = vmatprep.subr.bf16.mxu0 %v275
        %422 = vmatpush1.bf16.msra.mxu0 %v274
        %423 = vmatprep.subr.bf16.mxu0 %v325
        %424 = vmatpush1.bf16.msra.mxu0 %v324
        %425 = vmatprep.subr.bf16.mxu0 %v327
        %426 = vmatpush1.bf16.msra.mxu0 %v326
        %427 = vmatprep.subr.bf16.mxu0 %v329
        %428 = vmatpush1.bf16.msra.mxu0 %v328
        %429 = vmatprep.subr.bf16.mxu0 %v379
        %430 = vmatpush1.bf16.msra.mxu0 %v378
        %431 = vmatprep.subr.bf16.mxu0 %v381
        %432 = vmatpush1.bf16.msra.mxu0 %v380
        %433 = vmatprep.subr.bf16.mxu0 %v383
        %434 = vmatpush1.bf16.msra.mxu0 %v382
        %435 = vmatprep.subr.bf16.mxu0 0
        %436 = vmatpush1.bf16.msra.mxu0 0
        %437 = vmatprep.subr.bf16.mxu0 0
        %438 = vmatpush1.bf16.msra.mxu0 0
        %439 = vmatprep.subr.bf16.mxu0 0
        %440 = vmatpush1.bf16.msra.mxu0 0
        %441 = vmatprep.subr.bf16.mxu0 0
        %442 = vmatpush1.bf16.msra.mxu0 0
        %443 = vmatprep.mubr.bf16.mxu0 %v409
        %444 = vmatmul.mubr.bf16.gmra.mrb[0].mxu0 %v404
        %v445 = vpop.f32.mrb[0].mxu0
        %v446 = vadd.f32 %v391, %v445
        %v447 = vpop.f32.mrb[0].mxu0
        %v448 = vadd.f32 %v391, %v447
        %v449 = vpop.f32.mrb[0].mxu0
        %v450 = vadd.f32 %v396, %v449
        %v451 = vpop.f32.mrb[0].mxu0
        %v452 = vadd.f32 %v396, %v451
        %453 = vdwg.mxu0
        %454 = vst [vmem:[%s188] sm:$0xff] %v446
        %455 = vst [vmem:[%s188 + $0x8] sm:$0xff] %v448
        %456 = vst [vmem:[%s188 + $0x10] sm:$0xff] %v450
        %457 = vst [vmem:[%s188 + $0x18] sm:$0xff] %v452
        %s458 = sand.u32 %s96, 1
        %s459 = scalar_lea.sflag [#allocation4], %s458
        %s460 = sand.u32 %s96, 1
        %s461 = smul.addr %s460, 32
        %s462 = scalar_lea.vmem [#allocation5], %s461
        // Predicated region
        $region37: #{tpu_custom_call.1} parent=31 // pred_check
          %p463 = pneg %p106
        $region38: #{tpu_custom_call.1} parent=31 // pred_check_branch
          %465 = sbr.rel (%p463) target = $region40
        $region39: #{tpu_custom_call.1} parent=31 // pred_region
          %s466 = smul.u32 2, %s20
          %s468 = ssub.s32 512, 512
          %469 = vsyncadd %s459, %s468
          %s470 = smul.addr %s466, 128
          %s471 = scalar_lea.hbm %s3, %s470
          %s472 = sshll.u32 %s462, 4
          %s473 = int_to_ptr.vmem [resolvable:$true] %s472
          %478 = dma.vmem_to_hbm [thread:$0]  %s473, 512, %s471, %s459, 256, 512, 16
        $region40: #{tpu_custom_call.1} parent=31 // pred_fallthru
          _
      $region32: #{tpu_custom_call.1} parent=5 // pred_fallthru
        _
      %p479 = scmp.le.s32.totalorder 2, %s15
      // Predicated region
      $region41: #{tpu_custom_call.1} parent=5 // pred_check
        %p480 = pneg %p479
      $region42: #{tpu_custom_call.1} parent=5 // pred_check_branch
        %482 = sbr.rel (%p480) target = $region44
      $region43: #{tpu_custom_call.1} parent=5 // pred_region
        %s483 = ssub.s32 %s15, 2
        // Predicated region
        $region45: #{tpu_custom_call.1} parent=43 // pred_check
          %p484 = pneg %p112
        $region46: #{tpu_custom_call.1} parent=43 // pred_check_branch
          %486 = sbr.rel (%p484) target = $region48
        $region47: #{tpu_custom_call.1} parent=43 // pred_region
          %s487 = sand.u32 %s97, 1
          %s488 = scalar_lea.sflag [#allocation4], %s487
          %s489 = sand.u32 %s97, 1
          %s490 = smul.addr %s489, 32
          %s491 = scalar_lea.vmem [#allocation5], %s490
          %492 = dma.done %s488, 512
        $region48: #{tpu_custom_call.1} parent=43 // pred_fallthru
          _
      $region44: #{tpu_custom_call.1} parent=5 // pred_fallthru
        _
    $region6: #{tpu_custom_call.1} parent=1 // loop_footer
      %s19 = sadd.s32 1, %s15
    $region7: #{tpu_custom_call.1} parent=1 // loop_footer_branch
      %14 = sbr.rel target = $region3
    $region8: #{tpu_custom_call.1} parent=1 // loop_exit
      _
    %493 = vsyncpa [#allocation3], 1
    %s494 = scalar_lea.sflag [#allocation3], 1
    %495 = vsyncpa %s494, 1
    %496 = vsyncpa [#allocation4], 1
    %s497 = scalar_lea.sflag [#allocation4], 1
    %498 = vsyncpa %s497, 1

</llo_original>
